<compile_context>
chip_gen: v6e
topology: v6e:2x2x1
jax: 0.10.0
libtpu: 0.0.40
codegen_flags: <defaults>
</compile_context>

<pallas_src>
import functools
import math

import jax
import jax.numpy as jnp
import numpy as np
from jax.experimental import pallas as pl
from jax.experimental.pallas import tpu as pltpu


def _rmse_kernel(mask_ref, xp_ref, xt_ref, out_ref, *,
                 block_rows, pred_dim, steps_per_core, valid_rows):
    """Grid = (core, row_block). Accumulates lane-wise partial sums of the
    per-group L2 norms into this core's (1, L) output slot."""
    c = pl.program_id(0)
    i = pl.program_id(1)

    @pl.when(i == 0)
    def _():
        out_ref[...] = jnp.zeros_like(out_ref)

    diff = xp_ref[...].astype(jnp.float32) - xt_ref[...].astype(jnp.float32)
    sq = diff * diff                                       # (block_rows, L)

    # Sum every aligned run of `pred_dim` adjacent lanes via a shift-add tree.
    # Stays lane-dense (rotate + add), no relayout to a (..., pred_dim) shape.
    # Afterwards lane g*pred_dim holds sum_{j<pred_dim} sq[:, g*pred_dim + j];
    # wraparound only touches lanes > L - pred_dim, never a group start.
    acc = sq
    if pred_dim > 1:
        if pred_dim & (pred_dim - 1) == 0:                 # power of two: log tree
            s = 1
            while s < pred_dim:
                acc = acc + jnp.roll(acc, -s, axis=1)
                s *= 2
        else:                                              # general small pred_dim
            for j in range(1, pred_dim):
                acc = acc + jnp.roll(sq, -j, axis=1)

    # Keep only group-start lanes and rows that exist in the real array (the
    # last row-block window may hang off the end of the array -> garbage data).
    step = c * steps_per_core + i                          # logical (unclamped) step
    rows_left = valid_rows - step * block_rows             # may be <= 0
    row_ids = jax.lax.broadcasted_iota(jnp.int32, (block_rows, 1), 0)
    keep = jnp.logical_and(mask_ref[...] != 0, row_ids < rows_left)
    l2 = jnp.sqrt(jnp.where(keep, acc, 0.0))               # (block_rows, L)

    # Lane-wise partial sums only; cross-lane reduction + 1/(B*E) scaling are
    # done in the wrapper (required for the per-core output slots).
    out_ref[...] += jnp.sum(l2, axis=0, keepdims=True)


@functools.partial(
    jax.jit,
    static_argnames=("target_block_bytes", "max_lanes", "vmem_limit_bytes"))
def rmse_loss(x_pred, x_true, *, target_block_bytes=2 * 1024 * 1024,
              max_lanes=1024, vmem_limit_bytes=48 * 1024 * 1024):
    """x_pred, x_true: (batch, enc_steps, dec_steps, pred_dim) -> scalar."""
    assert x_pred.shape == x_true.shape, (x_pred.shape, x_true.shape)
    B, E, D, P = x_pred.shape
    groups = B * E * D                     # number of L2-norm groups
    n = groups * P                         # elements per input
    itemsize = jnp.dtype(x_pred.dtype).itemsize

    # Lane-dense layout: view the flat data as (R, L) with L a multiple of both
    # 128 and P (so no group straddles a lane-row).  Prefer an L that divides n
    # exactly -> copy-free reshape, no padding and no extra HBM traffic.
    base = (128 * P) // math.gcd(128, P)   # lcm(128, P)
    cap = max(base, max_lanes)
    L = 0
    for m in range(cap // base, 0, -1):
        cand = base * m
        if n % cand == 0:
            L = cand
            break

    xp = x_pred.reshape(-1)
    xt = x_true.reshape(-1)
    if L == 0:
        # Rare fallback (no lane-dense divisor exists): minimally zero-pad the
        # flat inputs; all-zero padded groups contribute sqrt(0) = 0.
        L = base
        padded = pl.cdiv(n, L) * L
        xp = jnp.pad(xp, (0, padded - n))
        xt = jnp.pad(xt, (0, padded - n))
        n = padded
    R = n // L
    xp = xp.reshape(R, L)
    xt = xt.reshape(R, L)

    # Multi-MiB row blocks, sublane-aligned (or the full extent for tiny inputs).
    sublanes = 8 * max(1, 4 // itemsize)
    if R <= sublanes:
        block_rows = R
    else:
        block_rows = min(max(1, target_block_bytes // (L * itemsize)), R)
        block_rows = max(sublanes, (block_rows // sublanes) * sublanes)
    steps_total = pl.cdiv(R, block_rows)

    # Leading "parallel" axis: on v7x the two TensorCores each reduce half of
    # the row blocks into their own partial-sum slot (harmless sequential loop
    # on single-TC v5e/v6e).  Fully out-of-range steps are clamped to the last
    # block and zeroed by the in-kernel row mask.
    num_cores = 2 if steps_total >= 2 else 1
    steps_per_core = pl.cdiv(steps_total, num_cores)
    last_block = steps_total - 1

    def data_map(c, i, _spc=steps_per_core, _last=last_block):
        return (jnp.minimum(c * _spc + i, _last), 0)

    # Compile-time group-start lane mask, passed as a tiny resident input.
    group_mask = jnp.asarray(
        (np.arange(L) % P == 0).astype(np.int32).reshape(1, L))

    kernel = functools.partial(
        _rmse_kernel, block_rows=block_rows, pred_dim=P,
        steps_per_core=steps_per_core, valid_rows=R)

    partials = pl.pallas_call(
        kernel,
        out_shape=jax.ShapeDtypeStruct((num_cores, L), jnp.float32),
        grid_spec=pltpu.PrefetchScalarGridSpec(
            num_scalar_prefetch=0,
            grid=(num_cores, steps_per_core),
            in_specs=[
                pl.BlockSpec((1, L), lambda c, i: (0, 0)),    # group-start mask
                pl.BlockSpec((block_rows, L), data_map),      # x_pred rows
                pl.BlockSpec((block_rows, L), data_map),      # x_true rows
            ],
            out_specs=pl.BlockSpec((1, L), lambda c, i: (c, 0)),
        ),
        compiler_params=pltpu.CompilerParams(
            dimension_semantics=("parallel", "arbitrary"),
            vmem_limit_bytes=vmem_limit_bytes,
        ),
        cost_estimate=pl.CostEstimate(
            flops=5 * n,
            transcendentals=groups,
            bytes_accessed=2 * n * itemsize + num_cores * L * 4,
        ),
    )(group_mask, xp, xt)

    # Tiny epilogue on the (num_cores, L) partials: cross-lane sum + mean scale.
    total = jnp.sum(partials) * (1.0 / float(B * E))
    return total.astype(x_pred.dtype)


def _rmse_ref(x_pred, x_true):
    """Pure-JAX reference mirroring the PyTorch module."""
    l2 = jnp.sqrt(jnp.sum((x_pred - x_true) ** 2, axis=3))
    l2 = jnp.sum(l2, axis=2)
    l2 = jnp.mean(l2, axis=1)
    return jnp.mean(l2, axis=0)


if __name__ == "__main__":
    key = jax.random.PRNGKey(0)
    shapes = [
        (2, 8, 8, 4),      # small case: copy-free lane-dense path, single block
        (2, 8, 104, 4),    # multi row-block: per-core slots + tail-row masking
        (2, 3, 5, 3),      # non-power-of-two pred_dim + minimal-pad fallback
    ]
    for idx, shape in enumerate(shapes):
        k1, k2 = jax.random.split(jax.random.fold_in(key, idx))
        x_pred = jax.random.normal(k1, shape, dtype=jnp.float32)
        x_true = jax.random.normal(k2, shape, dtype=jnp.float32)
        out = jax.block_until_ready(rmse_loss(x_pred, x_true))
        ref = jax.block_until_ready(_rmse_ref(x_pred, x_true))
        assert jnp.allclose(out, ref, rtol=1e-5, atol=1e-5), (shape, out, ref)
    print("KERNEL_OK")
</pallas_src>

<mosaic_0001>
module attributes {stable_mosaic.version = 11 : i64} {
  func.func @_rmse_kernel(%arg0: i32, %arg1: i32, %arg2: memref<1x512xi32, #tpu.memory_space<vmem>>, %arg3: memref<1x512xf32, #tpu.memory_space<vmem>>, %arg4: memref<1x512xf32, #tpu.memory_space<vmem>>, %arg5: memref<1x512xf32, #tpu.memory_space<vmem>>) attributes {dimension_semantics = [#tpu.dimension_semantics<parallel>, #tpu.dimension_semantics<arbitrary>], iteration_bounds = array<i64: 1, 1>, scalar_prefetch = 0 : i64, scratch_operands = 0 : i64, tpu.core_type = #tpu.core_type<tc>, window_params = [{pipeline_mode = #tpu.pipeline_mode<synchronous>, transform_indices = @transform_0, window_bounds = array<i64: 1, 512>}, {transform_indices = @transform_1, window_bounds = array<i64: 1, 512>}, {transform_indices = @transform_2, window_bounds = array<i64: 1, 512>}, {transform_indices = @transform_3, window_bounds = array<i64: 1, 512>}]} {
    %c0_i32 = arith.constant 0 : i32
    %0 = arith.cmpi eq, %arg1, %c0_i32 : i32
    %1 = arith.extui %0 : i1 to i32
    %c0_i32_0 = arith.constant 0 : i32
    %2 = arith.cmpi ne, %1, %c0_i32_0 : i32
    scf.if %2 {
      %cst_14 = arith.constant 0.000000e+00 : f32
      %35 = vector.broadcast %cst_14 : f32 to vector<1x512xf32>
      %c0_15 = arith.constant 0 : index
      %c0_16 = arith.constant 0 : index
      %36 = vector.load %arg5[%c0_15, %c0_16] : memref<1x512xf32, #tpu.memory_space<vmem>>, vector<1x512xf32>
      tpu.vector_store %arg5[%c0_15, %c0_16], %35 {strides = array<i32>} : memref<1x512xf32, #tpu.memory_space<vmem>>, vector<1x512xf32>,
    } else {
    }
    %c0 = arith.constant 0 : index
    %c0_1 = arith.constant 0 : index
    %3 = vector.load %arg3[%c0, %c0_1] : memref<1x512xf32, #tpu.memory_space<vmem>>, vector<1x512xf32>
    %c0_2 = arith.constant 0 : index
    %c0_3 = arith.constant 0 : index
    %4 = vector.load %arg4[%c0_2, %c0_3] : memref<1x512xf32, #tpu.memory_space<vmem>>, vector<1x512xf32>
    %5 = arith.subf %3, %4 : vector<1x512xf32>
    %6 = arith.mulf %5, %5 : vector<1x512xf32>
    %7 = vector.extract_strided_slice %6 {offsets = [0, 1], sizes = [1, 511], strides = [1, 1]} : vector<1x512xf32> to vector<1x511xf32>
    %8 = vector.extract_strided_slice %6 {offsets = [0, 0], sizes = [1, 1], strides = [1, 1]} : vector<1x512xf32> to vector<1x1xf32>
    %9 = tpu.concatenate %7, %8 in 1 : vector<1x511xf32>, vector<1x1xf32> -> vector<1x512xf32>
    %10 = arith.addf %6, %9 : vector<1x512xf32>
    %11 = vector.extract_strided_slice %10 {offsets = [0, 2], sizes = [1, 510], strides = [1, 1]} : vector<1x512xf32> to vector<1x510xf32>
    %12 = vector.extract_strided_slice %10 {offsets = [0, 0], sizes = [1, 2], strides = [1, 1]} : vector<1x512xf32> to vector<1x2xf32>
    %13 = tpu.concatenate %11, %12 in 1 : vector<1x510xf32>, vector<1x2xf32> -> vector<1x512xf32>
    %14 = arith.addf %10, %13 : vector<1x512xf32>
    %c1_i32 = arith.constant 1 : i32
    %15 = arith.muli %arg0, %c1_i32 : i32
    %16 = arith.addi %15, %arg1 : i32
    %c1_i32_4 = arith.constant 1 : i32
    %17 = arith.muli %16, %c1_i32_4 : i32
    %c1_i32_5 = arith.constant 1 : i32
    %18 = arith.subi %c1_i32_5, %17 : i32
    %19 = tpu.iota {dimensions = array<i32: 0>} : vector<1x1xi32>
    %c0_6 = arith.constant 0 : index
    %c0_7 = arith.constant 0 : index
    %20 = vector.load %arg2[%c0_6, %c0_7] : memref<1x512xi32, #tpu.memory_space<vmem>>, vector<1x512xi32>
    %c0_i32_8 = arith.constant 0 : i32
    %21 = vector.broadcast %c0_i32_8 : i32 to vector<1x512xi32>
    %22 = arith.cmpi ne, %20, %21 : vector<1x512xi32>
    %23 = vector.broadcast %18 : i32 to vector<1x1xi32>
    %24 = arith.cmpi slt, %19, %23 : vector<1x1xi32>
    %25 = vector.broadcast %24 : vector<1x1xi1> to vector<1x512xi1>
    %26 = arith.andi %22, %25 : vector<1x512xi1>
    %cst = arith.constant 0.000000e+00 : f32
    %27 = vector.broadcast %cst : f32 to vector<1x512xf32>
    %28 = arith.select %26, %14, %27 : vector<1x512xi1>, vector<1x512xf32>
    %29 = math.sqrt %28 : vector<1x512xf32>
    %c0_9 = arith.constant 0 : index
    %c0_10 = arith.constant 0 : index
    %30 = vector.load %arg5[%c0_9, %c0_10] : memref<1x512xf32, #tpu.memory_space<vmem>>, vector<1x512xf32>
    %cst_11 = arith.constant dense<0.000000e+00> : vector<512xf32>
    %31 = vector.multi_reduction <add>, %29, %cst_11 [0] : vector<1x512xf32> to vector<512xf32>
    %32 = vector.shape_cast %31 : vector<512xf32> to vector<1x512xf32>
    %33 = arith.addf %30, %32 : vector<1x512xf32>
    %c0_12 = arith.constant 0 : index
    %c0_13 = arith.constant 0 : index
    %34 = vector.load %arg5[%c0_12, %c0_13] : memref<1x512xf32, #tpu.memory_space<vmem>>, vector<1x512xf32>
    tpu.vector_store %arg5[%c0_12, %c0_13], %33 {strides = array<i32>} : memref<1x512xf32, #tpu.memory_space<vmem>>, vector<1x512xf32>,
    return
  }
  func.func @transform_0(%arg0: i32, %arg1: i32) -> (i32, i32) {
    %c0_i32 = arith.constant 0 : i32
    %c0_i32_0 = arith.constant 0 : i32
    %c0_i32_1 = arith.constant 0 : i32
    return %c0_i32, %c0_i32_0 : i32, i32
  }
  func.func @transform_1(%arg0: i32, %arg1: i32) -> (i32, i32) {
    %c1_i32 = arith.constant 1 : i32
    %0 = arith.muli %arg0, %c1_i32 : i32
    %1 = arith.addi %0, %arg1 : i32
    %c0_i32 = arith.constant 0 : i32
    %2 = arith.minsi %1, %c0_i32 : i32
    %c0_i32_0 = arith.constant 0 : i32
    %c0_i32_1 = arith.constant 0 : i32
    return %2, %c0_i32_0 : i32, i32
  }
  func.func @transform_2(%arg0: i32, %arg1: i32) -> (i32, i32) {
    %c1_i32 = arith.constant 1 : i32
    %0 = arith.muli %arg0, %c1_i32 : i32
    %1 = arith.addi %0, %arg1 : i32
    %c0_i32 = arith.constant 0 : i32
    %2 = arith.minsi %1, %c0_i32 : i32
    %c0_i32_0 = arith.constant 0 : i32
    %c0_i32_1 = arith.constant 0 : i32
    return %2, %c0_i32_0 : i32, i32
  }
  func.func @transform_3(%arg0: i32, %arg1: i32) -> (i32, i32) {
    %c0_i32 = arith.constant 0 : i32
    %c0_i32_0 = arith.constant 0 : i32
    return %arg0, %c0_i32 : i32, i32
  }
}

</mosaic_0001>

<llo_original>
// kernel: rmse_loss.1
$region0: #{rmse_loss.1}
  #allocation0 [shape = 'u32[]', space=smem, size = 0x4, offset = 0x4, fixed_abs, tag = 'smem constant byte address 0x4 - core index']
  #allocation1 [shape = 'u32[144,128]{1,0:T(1,128)}', space=vmem, size = 0x12000, scoped, tag = 'internal scratch']
  %s0 = inlined_call_operand.vmem [shape: s32[1,512], index: 0, kind: input, shape index: {}]
  %s1 = inlined_call_operand.vmem [shape: f32[1,512], index: 1, kind: input, shape index: {}]
  %s2 = inlined_call_operand.vmem [shape: f32[1,512], index: 2, kind: input, shape index: {}]
  %s3 = inlined_call_operand.vmem [shape: f32[1,512], index: 3, kind: output, shape index: {}]
  %s4 = sld [smem:[#allocation0]]
  $region26: #{rmse_loss.1} parent=0
    _
  %s6 = ssub.s32 1, %s4
  %s7 = scalar_select 0, %s6, %s4
  // Predicated region
  $region2: #{rmse_loss.1} parent=0 // pred_check
    _
  $region3: #{rmse_loss.1} parent=0 // pred_check_branch
    %9 = sbr.rel (0) target = $region5
  $region4: #{rmse_loss.1} parent=0 // pred_region
    _
  $region5: #{rmse_loss.1} parent=0 // pred_fallthru
    _
  // Predicated region
  $region6: #{rmse_loss.1} parent=0 // pred_check
    _
  $region7: #{rmse_loss.1} parent=0 // pred_check_branch
    %11 = sbr.rel (0) target = $region9
  $region8: #{rmse_loss.1} parent=0 // pred_region
    %s12 = sadd.s32 0, 0
    %p13 = scmp.lt.s32.totalorder %s12, 0
    %s14 = scalar_select %p13, %s12, 0
    %p15 = scmp.lt.s32.totalorder %s14, 0
    %s16 = scalar_select %p15, %s14, 0
    %s17 = smul.addr %s16, 4
    %s18 = scalar_lea.vmem %s1, %s17
    %s19 = sadd.s32 0, 0
    %p20 = scmp.lt.s32.totalorder %s19, 0
    %s21 = scalar_select %p20, %s19, 0
  $region9: #{rmse_loss.1} parent=0 // pred_fallthru
    _
  // Predicated region
  $region10: #{rmse_loss.1} parent=0 // pred_check
    _
  $region11: #{rmse_loss.1} parent=0 // pred_check_branch
    %23 = sbr.rel (0) target = $region13
  $region12: #{rmse_loss.1} parent=0 // pred_region
    %s24 = sadd.s32 0, 0
    %p25 = scmp.lt.s32.totalorder %s24, 0
    %s26 = scalar_select %p25, %s24, 0
    %p27 = scmp.lt.s32.totalorder %s26, 0
    %s28 = scalar_select %p27, %s26, 0
    %s29 = smul.addr %s28, 4
    %s30 = scalar_lea.vmem %s2, %s29
    %s31 = sadd.s32 0, 0
    %p32 = scmp.lt.s32.totalorder %s31, 0
    %s33 = scalar_select %p32, %s31, 0
  $region13: #{rmse_loss.1} parent=0 // pred_fallthru
    _
  %s34 = sadd.s32 0, 0
  %p35 = scmp.lt.s32.totalorder %s34, 0
  %s36 = scalar_select %p35, %s34, 0
  %p37 = scmp.lt.s32.totalorder %s36, 0
  %s38 = scalar_select %p37, %s36, 0
  %s39 = smul.addr %s38, 4
  %s40 = scalar_lea.vmem %s1, %s39
  %s41 = sadd.s32 0, 0
  %p42 = scmp.lt.s32.totalorder %s41, 0
  %s43 = scalar_select %p42, %s41, 0
  %p44 = scmp.lt.s32.totalorder %s43, 0
  %s45 = scalar_select %p44, %s43, 0
  %s46 = smul.addr %s45, 4
  %s47 = scalar_lea.vmem %s2, %s46
  %s48 = sadd.s32 0, 0
  %p49 = scmp.lt.s32.totalorder %s48, 0
  %s50 = scalar_select %p49, %s48, 0
  %p51 = scmp.lt.s32.totalorder %s50, 0
  %s52 = scalar_select %p51, %s50, 0
  %s53 = smul.addr %s52, 4
  %s54 = scalar_lea.vmem %s1, %s53
  %s55 = sadd.s32 0, 0
  %p56 = scmp.lt.s32.totalorder %s55, 0
  %s57 = scalar_select %p56, %s55, 0
  %s58 = sadd.s32 0, 0
  %p59 = scmp.lt.s32.totalorder %s58, 0
  %s60 = scalar_select %p59, %s58, 0
  %p61 = scmp.lt.s32.totalorder %s60, 0
  %s62 = scalar_select %p61, %s60, 0
  %s63 = smul.addr %s62, 4
  %s64 = scalar_lea.vmem %s2, %s63
  %s65 = sadd.s32 0, 0
  %p66 = scmp.lt.s32.totalorder %s65, 0
  %s67 = scalar_select %p66, %s65, 0
  %p68 = scmp.eq.s32.totalorder 0, 0
  // Predicated region
  $region14: #{rmse_loss.1} parent=0 // pred_check
    %p69 = pneg %p68
  $region15: #{rmse_loss.1} parent=0 // pred_check_branch
    %71 = sbr.rel (%p69) target = $region17
  $region16: #{rmse_loss.1} parent=0 // pred_region
    %v72 = vlaneseq
    %vm73 = vcmp.ge.s32.totalorder %v72, 0
    %vm74 = vcmp.lt.s32.totalorder %v72, 512
    %vm75 = vmand %vm73, %vm74
    %76 = vst.msk [vmem:[%s3] sm:$0xf] %vm75, 0.0
  $region17: #{rmse_loss.1} parent=0 // pred_fallthru
    _
  %v77 = vld [vmem:[%s54] sm:$0xf]
  %v78 = vld [vmem:[%s64] sm:$0xf]
  %v79 = vsub.f32 %v77, %v78
  %v80 = vmul.f32 %v79, %v79
  %v82 = vlaneseq
  %v83 = vshrl.u32 %v82, 7
  %v84 = vsub.s32 0, %v83
  %v85 = vrot.slane %v80, %v84
  %v86 = vlaneseq
  %v87 = vshrl.u32 %v86, 7
  %v88 = vsub.s32 1, %v87
  %v89 = vrot.slane %v80, %v88
  %v90 = vlaneseq
  %v91 = vshrl.u32 %v90, 7
  %v92 = vsub.s32 2, %v91
  %v93 = vrot.slane %v80, %v92
  %v94 = vlaneseq
  %v95 = vshrl.u32 %v94, 7
  %v96 = vsub.s32 3, %v95
  %v97 = vrot.slane %v80, %v96
  %98 = vrot.lane.b32.xlu0 %v85, 127
  %v99 = vpop.permute.xlu0 %98
  %100 = vrot.lane.b32.xlu0 %v89, 127
  %v101 = vpop.permute.xlu0 %100
  %102 = vrot.lane.b32.xlu0 %v93, 127
  %v103 = vpop.permute.xlu0 %102
  %104 = vrot.lane.b32.xlu0 %v97, 127
  %v105 = vpop.permute.xlu0 %104
  %vm106 = vcmask 1039360
  %v107 = vsel %vm106, %v99, %v101
  %v108 = vsel %vm106, %v101, %v103
  %v109 = vsel %vm106, %v103, %v105
  %v112 = vsel %vm106, %v105, %v99
  %v114 = vcombine.low %v107, %v108
  %v115 = vcombine.low %v109, %v112
  %v117 = vunpack.c.l.s4 1966171168
  %v118 = vunpack.c.0.s8 %v117
  %v119 = vlaneseq
  %v120 = vshrl.u32 %v119, 7
  %v121 = vsub.s32 %v118, %v120
  %v122 = vrot.slane %v114, %v121
  %v124 = vunpack.c.l.s4 1966171168
  %v125 = vunpack.c.0.s8 %v124
  %v126 = vlaneseq
  %v127 = vshrl.u32 %v126, 7
  %v128 = vsub.s32 %v125, %v127
  %v129 = vrot.slane %v115, %v128
  %v130 = vcombine.low %v122, %v129
  %v132 = vunpack.c.l.s4 1966171168
  %v133 = vunpack.c.0.s8 %v132
  %v134 = vlaneseq
  %v135 = vshrl.u32 %v134, 7
  %v136 = vsub.s32 %v133, %v135
  %v137 = vrot.slane %v130, %v136
  %v139 = vadd.f32 %v80, %v137
  %v141 = vlaneseq
  %v142 = vshrl.u32 %v141, 7
  %v143 = vsub.s32 0, %v142
  %v144 = vrot.slane %v139, %v143
  %v145 = vlaneseq
  %v146 = vshrl.u32 %v145, 7
  %v147 = vsub.s32 1, %v146
  %v148 = vrot.slane %v139, %v147
  %v149 = vlaneseq
  %v150 = vshrl.u32 %v149, 7
  %v151 = vsub.s32 2, %v150
  %v152 = vrot.slane %v139, %v151
  %v153 = vlaneseq
  %v154 = vshrl.u32 %v153, 7
  %v155 = vsub.s32 3, %v154
  %v156 = vrot.slane %v139, %v155
  %157 = vrot.lane.b32.xlu0 %v144, 126
  %v158 = vpop.permute.xlu0 %157
  %159 = vrot.lane.b32.xlu0 %v148, 126
  %v160 = vpop.permute.xlu0 %159
  %161 = vrot.lane.b32.xlu0 %v152, 126
  %v162 = vpop.permute.xlu0 %161
  %163 = vrot.lane.b32.xlu0 %v156, 126
  %v164 = vpop.permute.xlu0 %163
  %vm165 = vcmask 1031168
  %v166 = vsel %vm165, %v158, %v160
  %v167 = vsel %vm165, %v160, %v162
  %v168 = vsel %vm165, %v162, %v164
  %v171 = vsel %vm165, %v164, %v158
  %v173 = vcombine.low %v166, %v167
  %v174 = vcombine.low %v168, %v171
  %v176 = vunpack.c.l.s4 1966171168
  %v177 = vunpack.c.0.s8 %v176
  %v178 = vlaneseq
  %v179 = vshrl.u32 %v178, 7
  %v180 = vsub.s32 %v177, %v179
  %v181 = vrot.slane %v173, %v180
  %v183 = vunpack.c.l.s4 1966171168
  %v184 = vunpack.c.0.s8 %v183
  %v185 = vlaneseq
  %v186 = vshrl.u32 %v185, 7
  %v187 = vsub.s32 %v184, %v186
  %v188 = vrot.slane %v174, %v187
  %v189 = vcombine.low %v181, %v188
  %v191 = vunpack.c.l.s4 1966171168
  %v192 = vunpack.c.0.s8 %v191
  %v193 = vlaneseq
  %v194 = vshrl.u32 %v193, 7
  %v195 = vsub.s32 %v192, %v194
  %v196 = vrot.slane %v189, %v195
  %v198 = vadd.f32 %v139, %v196
  %s199 = sadd.s32 0, 0
  %s200 = ssub.s32 1, %s199
  %v201 = vlaneseq
  %v202 = vshrl.u32 %v201, 7
  %v203 = vld [vmem:[%s0] sm:$0xf]
  %vm204 = vcmp.ne.s32.totalorder %v203, 0
  %v205 = vstv %s200
  %vm206 = vcmp.lt.s32.totalorder %v202, %v205
  %v207 = vsel %vm206, 1, 0
  %vm208 = vcmp.eq.s32.totalorder %v207, 1
  %v209 = vsel %vm208, 1, 0
  %v210 = vlaneseq
  %v211 = vshrl.u32 %v210, 7
  %v212 = vsub.s32 0, %v211
  %v213 = vrot.slane %v209, %v212
  %vm214 = vcmp.ne.s32.totalorder %v213, 0
  %vm215 = vmand %vm204, %vm214
  %v216 = vsel %vm215, %v198, 0.0
  %v217 = vrsqrt.pop %v216
  %v218 = vmul.f32 %v216, %v217
  %vm219 = vcmp.eq.f32.partialorder %v216, inf
  %v220 = vsel %vm219, %v216, %v218
  %vm221 = vcmp.eq.f32.partialorder %v216, 0.0
  %v222 = vand.u32 %v216, 2147483648
  %v223 = vsel %vm221, %v222, %v220
  %v224 = vld [vmem:[%s3] sm:$0xf]
  %v225 = vadd.f32 %v223, 0.0
  %v226 = vadd.f32 %v224, %v225
  %v227 = vlaneseq
  %vm228 = vcmp.ge.s32.totalorder %v227, 0
  %vm229 = vcmp.lt.s32.totalorder %v227, 512
  %vm230 = vmand %vm228, %vm229
  %231 = vst.msk [vmem:[%s3] sm:$0xf] %vm230, %v226
  // Predicated region
  $region18: #{rmse_loss.1} parent=0 // pred_check
    _
  $region19: #{rmse_loss.1} parent=0 // pred_check_branch
    %233 = sbr.rel (0) target = $region21
  $region20: #{rmse_loss.1} parent=0 // pred_region
    _
  $region21: #{rmse_loss.1} parent=0 // pred_fallthru
    _
  // Predicated region
  $region22: #{rmse_loss.1} parent=0 // pred_check
    _
  $region23: #{rmse_loss.1} parent=0 // pred_check_branch
    %235 = sbr.rel (0) target = $region25
  $region24: #{rmse_loss.1} parent=0 // pred_region
    _
  $region25: #{rmse_loss.1} parent=0 // pred_fallthru
    _

</llo_original>
